<compile_context>
chip_gen: v5e
topology: v5e:2x2
jax: 0.10.0
libtpu: 0.0.40
codegen_flags: <defaults>
</compile_context>

<pallas_src>
import jax
import jax.numpy as jnp
from jax.experimental import pallas as pl
from jax.experimental.pallas import tpu as pltpu

_LANE = 128
_SUBLANE = 8


def _round_up(x, m):
    return (x + m - 1) // m * m


def encoder_kernel(x_ref, w_ref, b_ref, eps_ref, o_ref):
    # Single fused matmul for both heads: [TN, Din] @ [Din, 2*Dp] -> [TN, 2*Dp]
    fused = jnp.dot(x_ref[...], w_ref[...],
                    preferred_element_type=jnp.float32) + b_ref[...]
    dp = o_ref.shape[-1]                      # static padded Dout (multiple of 128)
    mean = fused[:, :dp]                      # lane-aligned static slices
    log_var = fused[:, dp:]
    # Reparameterization trick: exp rides the EUP slot, mul/add on the VPU.
    o_ref[...] = (mean + jnp.exp(0.5 * log_var) * eps_ref[...]).astype(o_ref.dtype)


def encoder_forward(x, w_mean, b_mean, w_logvar, b_logvar, eps, *, tile_n=512):
    """Encoder forward: mean + exp(0.5*log_var) * eps, in one Pallas kernel.

    x:   [N, Din]        w_*: [Din, Dout]      b_*: [Dout]
    eps: [N, Dout]       returns [N, Dout]
    """
    N, Din = x.shape
    Dout = w_mean.shape[1]

    # Lane-dense padding of the output width; sublane padding of the batch.
    dp = _round_up(Dout, _LANE)
    tn = min(tile_n, _round_up(N, _SUBLANE))     # >=512-row tiles when N is large
    np_ = _round_up(N, tn)

    # Fused, padded parameters: W_cat [Din, 2*dp], b_cat [1, 2*dp].
    wm = jnp.pad(w_mean, ((0, 0), (0, dp - Dout)))
    wv = jnp.pad(w_logvar, ((0, 0), (0, dp - Dout)))
    w_cat = jnp.concatenate([wm, wv], axis=1)
    bm = jnp.pad(b_mean, (0, dp - Dout))
    bv = jnp.pad(b_logvar, (0, dp - Dout))
    b_cat = jnp.concatenate([bm, bv], axis=0).reshape(1, 2 * dp)

    x_p = jnp.pad(x, ((0, np_ - N), (0, 0)))
    eps_p = jnp.pad(eps, ((0, np_ - N), (0, dp - Dout)))

    # VMEM budget (double-buffered x/eps/out tiles + resident weights) is tiny
    # for realistic Din/Dout; with tn=512 it stays far under the v7x 32 MiB
    # scoped limit, so no vmem_limit_bytes override is needed.
    out_p = pl.pallas_call(
        encoder_kernel,
        out_shape=jax.ShapeDtypeStruct((np_, dp), x.dtype),
        grid_spec=pltpu.PrefetchScalarGridSpec(
            num_scalar_prefetch=0,
            grid=(np_ // tn,),
            in_specs=[
                pl.BlockSpec((tn, Din), lambda i: (i, 0)),      # x tile
                pl.BlockSpec((Din, 2 * dp), lambda i: (0, 0)),  # fused W (resident)
                pl.BlockSpec((1, 2 * dp), lambda i: (0, 0)),    # fused bias (resident)
                pl.BlockSpec((tn, dp), lambda i: (i, 0)),       # eps tile
            ],
            out_specs=pl.BlockSpec((tn, dp), lambda i: (i, 0)),
        ),
        compiler_params=pltpu.CompilerParams(
            # Row blocks are independent: shard across TensorCores (v7x: 2 TCs).
            dimension_semantics=("parallel",)),
    )(x_p, w_cat, b_cat, eps_p)

    return out_p[:N, :Dout]


def encoder_kl(w_mean, b_mean, w_logvar, b_logvar):
    # KL(Q||Prior) = 0.5 * sum(1 + log_var - mean^2 - exp(log_var)), evaluated
    # at x = I exactly like the torch module's kl().  Cheap pure-JAX glue.
    in_dim = w_mean.shape[0]
    eye = jnp.eye(in_dim, dtype=w_mean.dtype)
    mean = eye @ w_mean + b_mean[None, :]
    log_var = eye @ w_logvar + b_logvar[None, :]
    kl = 1.0 + log_var - mean ** 2 - jnp.exp(log_var)
    return 0.5 * jnp.sum(kl)


if __name__ == "__main__":
    # Small deterministic setup: batch=8, in_dim=32, out_dim=32.
    N, IN_DIM, OUT_DIM = 8, 32, 32
    key = jax.random.PRNGKey(0)
    kx, kwm, kbm, kwv, kbv, keps = jax.random.split(key, 6)

    x = jax.random.normal(kx, (N, IN_DIM), dtype=jnp.float32)

    bound = 1.0 / jnp.sqrt(IN_DIM)
    w_mean = jax.random.uniform(kwm, (IN_DIM, OUT_DIM), jnp.float32, -bound, bound)
    b_mean = jax.random.uniform(kbm, (OUT_DIM,), jnp.float32, -bound, bound)
    w_logvar = jax.random.uniform(kwv, (IN_DIM, OUT_DIM), jnp.float32, -bound, bound)
    b_logvar = jax.random.uniform(kbv, (OUT_DIM,), jnp.float32, -bound, bound)

    # eps ~ N(0,1), same role as torch.randn_like(mean).
    eps = jax.random.normal(keps, (N, OUT_DIM), dtype=jnp.float32)

    out = jax.block_until_ready(
        encoder_forward(x, w_mean, b_mean, w_logvar, b_logvar, eps))

    assert out.shape == (N, OUT_DIM) and out.dtype == jnp.float32
    assert bool(jnp.all(jnp.isfinite(out)))

    # Pure-JAX reference with the same eps must match the kernel.
    mean_ref = x @ w_mean + b_mean[None, :]
    logvar_ref = x @ w_logvar + b_logvar[None, :]
    ref = mean_ref + jnp.exp(0.5 * logvar_ref) * eps
    assert bool(jnp.allclose(out, ref, atol=1e-5, rtol=1e-5))

    kl_val = jax.block_until_ready(encoder_kl(w_mean, b_mean, w_logvar, b_logvar))
    assert bool(jnp.isfinite(kl_val))

    print("KERNEL_OK")
</pallas_src>

<mosaic_0001>
module attributes {stable_mosaic.version = 11 : i64} {
  func.func @encoder_kernel(%arg0: i32, %arg1: memref<8x32xf32, #tpu.memory_space<vmem>>, %arg2: memref<32x256xf32, #tpu.memory_space<vmem>>, %arg3: memref<1x256xf32, #tpu.memory_space<vmem>>, %arg4: memref<8x128xf32, #tpu.memory_space<vmem>>, %arg5: memref<8x128xf32, #tpu.memory_space<vmem>>) attributes {dimension_semantics = [#tpu.dimension_semantics<parallel>], iteration_bounds = array<i64: 1>, scalar_prefetch = 0 : i64, scratch_operands = 0 : i64, tpu.core_type = #tpu.core_type<tc>, window_params = [{transform_indices = @transform_0, window_bounds = array<i64: 8, 32>}, {pipeline_mode = #tpu.pipeline_mode<synchronous>, transform_indices = @transform_1, window_bounds = array<i64: 32, 256>}, {pipeline_mode = #tpu.pipeline_mode<synchronous>, transform_indices = @transform_2, window_bounds = array<i64: 1, 256>}, {transform_indices = @transform_3, window_bounds = array<i64: 8, 128>}, {transform_indices = @transform_4, window_bounds = array<i64: 8, 128>}]} {
    %c0 = arith.constant 0 : index
    %c0_0 = arith.constant 0 : index
    %0 = vector.load %arg1[%c0, %c0_0] : memref<8x32xf32, #tpu.memory_space<vmem>>, vector<8x32xf32>
    %c0_1 = arith.constant 0 : index
    %c0_2 = arith.constant 0 : index
    %1 = vector.load %arg2[%c0_1, %c0_2] : memref<32x256xf32, #tpu.memory_space<vmem>>, vector<32x256xf32>
    %cst = arith.constant dense<0.000000e+00> : vector<8x256xf32>
    %2 = tpu.matmul %0, %1, %cst {dimension_numbers = #tpu.dot_dimension_numbers<[1], [0], [0], [1], [0, 0, 1, 1], [], []>} : vector<8x32xf32>, vector<32x256xf32>, vector<8x256xf32> -> vector<8x256xf32>
    %c0_3 = arith.constant 0 : index
    %c0_4 = arith.constant 0 : index
    %3 = vector.load %arg3[%c0_3, %c0_4] : memref<1x256xf32, #tpu.memory_space<vmem>>, vector<1x256xf32>
    %4 = vector.broadcast %3 : vector<1x256xf32> to vector<8x256xf32>
    %5 = arith.addf %2, %4 : vector<8x256xf32>
    %6 = vector.extract_strided_slice %5 {offsets = [0, 0], sizes = [8, 128], strides = [1, 1]} : vector<8x256xf32> to vector<8x128xf32>
    %7 = vector.extract_strided_slice %5 {offsets = [0, 128], sizes = [8, 128], strides = [1, 1]} : vector<8x256xf32> to vector<8x128xf32>
    %cst_5 = arith.constant 5.000000e-01 : f32
    %8 = vector.broadcast %cst_5 : f32 to vector<8x128xf32>
    %9 = arith.mulf %8, %7 : vector<8x128xf32>
    %10 = math.exp %9 : vector<8x128xf32>
    %c0_6 = arith.constant 0 : index
    %c0_7 = arith.constant 0 : index
    %11 = vector.load %arg4[%c0_6, %c0_7] : memref<8x128xf32, #tpu.memory_space<vmem>>, vector<8x128xf32>
    %12 = arith.mulf %10, %11 : vector<8x128xf32>
    %13 = arith.addf %6, %12 : vector<8x128xf32>
    %c0_8 = arith.constant 0 : index
    %c0_9 = arith.constant 0 : index
    %14 = vector.load %arg5[%c0_8, %c0_9] : memref<8x128xf32, #tpu.memory_space<vmem>>, vector<8x128xf32>
    tpu.vector_store %arg5[%c0_8, %c0_9], %13 {strides = array<i32>} : memref<8x128xf32, #tpu.memory_space<vmem>>, vector<8x128xf32>,
    return
  }
  func.func @transform_0(%arg0: i32) -> (i32, i32) {
    %c0_i32 = arith.constant 0 : i32
    %c0_i32_0 = arith.constant 0 : i32
    return %arg0, %c0_i32 : i32, i32
  }
  func.func @transform_1(%arg0: i32) -> (i32, i32) {
    %c0_i32 = arith.constant 0 : i32
    %c0_i32_0 = arith.constant 0 : i32
    %c0_i32_1 = arith.constant 0 : i32
    return %c0_i32, %c0_i32_0 : i32, i32
  }
  func.func @transform_2(%arg0: i32) -> (i32, i32) {
    %c0_i32 = arith.constant 0 : i32
    %c0_i32_0 = arith.constant 0 : i32
    %c0_i32_1 = arith.constant 0 : i32
    return %c0_i32, %c0_i32_0 : i32, i32
  }
  func.func @transform_3(%arg0: i32) -> (i32, i32) {
    %c0_i32 = arith.constant 0 : i32
    %c0_i32_0 = arith.constant 0 : i32
    return %arg0, %c0_i32 : i32, i32
  }
  func.func @transform_4(%arg0: i32) -> (i32, i32) {
    %c0_i32 = arith.constant 0 : i32
    %c0_i32_0 = arith.constant 0 : i32
    return %arg0, %c0_i32 : i32, i32
  }
}

</mosaic_0001>

<llo_original>
// kernel: tpu_custom_call.1
$region0: #{tpu_custom_call.1}
  #allocation0 [shape = 'u32[]', space=smem, size = 0x4, offset = 0x4, fixed_abs, tag = 'smem constant byte address 0x4 - core index']
  #allocation1 [shape = 'u32[72,128]{1,0:T(1,128)}', space=vmem, size = 0x9000, scoped, tag = 'internal scratch']
  %s0 = inlined_call_operand.hbm [shape: f32[8,32], index: 0, kind: input, shape index: {}]
  %s1 = inlined_call_operand.hbm [shape: f32[32,256], index: 1, kind: input, shape index: {}]
  %s2 = inlined_call_operand.hbm [shape: f32[1,256], index: 2, kind: input, shape index: {}]
  %s3 = inlined_call_operand.hbm [shape: f32[8,128], index: 3, kind: input, shape index: {}]
  %s4 = inlined_call_operand.hbm [shape: f32[8,128], index: 4, kind: output, shape index: {}]
  %s5 = sld [smem:[#allocation0]]
  $region42: #{tpu_custom_call.1} parent=0
    _
  %s7 = ssub.s32 1, %s5
  %s8 = scalar_select 0, %s7, %s5
  $region1: #{tpu_custom_call.1} parent=0
    #allocation2 [shape = 'u8[4096]{0}', space=vmem, size = 0x1000, scoped, tag = 'input window, operand 0, single buffered']
    #allocation3 [shape = 's32[1]{0}', space=sflag, size = 0x4, scoped, tag = 'scoped memory for tpu_custom_call.1']
    #allocation4 [shape = 's32[1]{0}', space=sflag, size = 0x4, scoped, tag = 'scoped memory for tpu_custom_call.1']
    #allocation5 [shape = 'u8[32768]{0}', space=vmem, size = 0x8000, scoped, tag = 'input window, operand 1, single buffered']
    #allocation6 [shape = 's32[1]{0}', space=sflag, size = 0x4, scoped, tag = 'scoped memory for tpu_custom_call.1']
    #allocation7 [shape = 'u8[1024]{0}', space=vmem, size = 0x400, scoped, tag = 'input window, operand 2, single buffered']
    #allocation8 [shape = 'u8[4096]{0}', space=vmem, size = 0x1000, scoped, tag = 'input window, operand 3, single buffered']
    #allocation9 [shape = 's32[1]{0}', space=sflag, size = 0x4, scoped, tag = 'scoped memory for tpu_custom_call.1']
    #allocation10 [shape = 'u8[4096]{0}', space=vmem, size = 0x1000, scoped, tag = 'output window, operand 0, single buffered']
    %9 = vsyncpa [#allocation3], 0
    %10 = vsyncpa [#allocation6], 0
    %11 = vsyncpa [#allocation9], 0
    %12 = vsyncpa [#allocation4], 0
    // Predicated region
    $region2: #{tpu_custom_call.1} parent=1 // pred_check
      _
    $region3: #{tpu_custom_call.1} parent=1 // pred_check_branch
      %14 = sbr.rel (0) target = $region5
    $region4: #{tpu_custom_call.1} parent=1 // pred_region
      %16 = vsyncadd [#allocation3], 0
      %s18 = sshll.u32 %s0, 4
      %s19 = int_to_ptr.hbm [resolvable:$true] %s18
      %s20 = sshll.u32 [#allocation2], 4
      %s21 = int_to_ptr.vmem [resolvable:$true] %s20
      %23 = dma.hbm_to_vmem [thread:$0]  %s19, 128, %s21, [#allocation3]
    $region5: #{tpu_custom_call.1} parent=1 // pred_fallthru
      _
    // Predicated region
    $region6: #{tpu_custom_call.1} parent=1 // pred_check
      _
    $region7: #{tpu_custom_call.1} parent=1 // pred_check_branch
      %25 = sbr.rel (0) target = $region9
    $region8: #{tpu_custom_call.1} parent=1 // pred_region
      %27 = vsyncadd [#allocation6], 0
      %s28 = sshll.u32 %s1, 4
      %s29 = int_to_ptr.hbm [resolvable:$true] %s28
      %s30 = sshll.u32 [#allocation5], 4
      %s31 = int_to_ptr.vmem [resolvable:$true] %s30
      %36 = dma.hbm_to_vmem [thread:$0]  %s29, 1024, %s31, [#allocation6], 256, 256, 16
    $region9: #{tpu_custom_call.1} parent=1 // pred_fallthru
      _
    // Predicated region
    $region10: #{tpu_custom_call.1} parent=1 // pred_check
      _
    $region11: #{tpu_custom_call.1} parent=1 // pred_check_branch
      %38 = sbr.rel (0) target = $region13
    $region12: #{tpu_custom_call.1} parent=1 // pred_region
      %40 = vsyncadd [#allocation6], 0
      %s42 = sshll.u32 %s2, 4
      %s43 = int_to_ptr.hbm [resolvable:$true] %s42
      %s44 = sshll.u32 [#allocation7], 4
      %s45 = int_to_ptr.vmem [resolvable:$true] %s44
      %47 = dma.hbm_to_vmem [thread:$0]  %s43, 32, %s45, [#allocation6]
    $region13: #{tpu_custom_call.1} parent=1 // pred_fallthru
      _
    // Predicated region
    $region14: #{tpu_custom_call.1} parent=1 // pred_check
      _
    $region15: #{tpu_custom_call.1} parent=1 // pred_check_branch
      %49 = sbr.rel (0) target = $region17
    $region16: #{tpu_custom_call.1} parent=1 // pred_region
      %51 = vsyncadd [#allocation9], 0
      %s53 = sshll.u32 %s3, 4
      %s54 = int_to_ptr.hbm [resolvable:$true] %s53
      %s55 = sshll.u32 [#allocation8], 4
      %s56 = int_to_ptr.vmem [resolvable:$true] %s55
      %58 = dma.hbm_to_vmem [thread:$0]  %s54, 128, %s56, [#allocation9]
    $region17: #{tpu_custom_call.1} parent=1 // pred_fallthru
      _
    // Predicated region
    $region18: #{tpu_custom_call.1} parent=1 // pred_check
      _
    $region19: #{tpu_custom_call.1} parent=1 // pred_check_branch
      %60 = sbr.rel (0) target = $region21
    $region20: #{tpu_custom_call.1} parent=1 // pred_region
      %62 = dma.done [#allocation3], 128
    $region21: #{tpu_custom_call.1} parent=1 // pred_fallthru
      _
    // Predicated region
    $region22: #{tpu_custom_call.1} parent=1 // pred_check
      _
    $region23: #{tpu_custom_call.1} parent=1 // pred_check_branch
      %64 = sbr.rel (0) target = $region25
    $region24: #{tpu_custom_call.1} parent=1 // pred_region
      %66 = dma.done [#allocation6], 1024
    $region25: #{tpu_custom_call.1} parent=1 // pred_fallthru
      _
    // Predicated region
    $region26: #{tpu_custom_call.1} parent=1 // pred_check
      _
    $region27: #{tpu_custom_call.1} parent=1 // pred_check_branch
      %68 = sbr.rel (0) target = $region29
    $region28: #{tpu_custom_call.1} parent=1 // pred_region
      %70 = dma.done [#allocation6], 32
    $region29: #{tpu_custom_call.1} parent=1 // pred_fallthru
      _
    // Predicated region
    $region30: #{tpu_custom_call.1} parent=1 // pred_check
      _
    $region31: #{tpu_custom_call.1} parent=1 // pred_check_branch
      %72 = sbr.rel (0) target = $region33
    $region32: #{tpu_custom_call.1} parent=1 // pred_region
      %74 = dma.done [#allocation9], 128
    $region33: #{tpu_custom_call.1} parent=1 // pred_fallthru
      _
    %v75 = vld [vmem:[#allocation2] sm:$0xff]
    %v76 = vld [vmem:[#allocation5] sm:$0xff]
    %v77 = vld [vmem:[#allocation5 + $0x8] sm:$0xff]
    %v78 = vld [vmem:[#allocation5 + $0x10] sm:$0xff]
    %v79 = vld [vmem:[#allocation5 + $0x18] sm:$0xff]
    %v80 = vld [vmem:[#allocation5 + $0x20] sm:$0xff]
    %v81 = vld [vmem:[#allocation5 + $0x28] sm:$0xff]
    %v82 = vld [vmem:[#allocation5 + $0x30] sm:$0xff]
    %v83 = vld [vmem:[#allocation5 + $0x38] sm:$0xff]
    %v84 = vld [vmem:[#allocation7] sm:$0x3]
    %v86 = vperm.slane %v84, 0
    %v87 = vperm.slane %v84, 1
    %vm90 = vcmask 261120
    %v92 = vsel %vm90, %v75, 0
    %94 = vmatpush.msra.mxu0 0.0
    %95 = vmatpush.msra.mxu0 0.0
    %96 = vmatpush.msra.mxu0 0.0
    %97 = vmatpush.msra.mxu0 0.0
    %98 = vmatpush.msra.mxu0 0.0
    %99 = vmatpush.msra.mxu0 0.0
    %100 = vmatpush.msra.mxu0 0.0
    %101 = vmatpush.msra.mxu0 0.0
    %102 = vmatpush.msra.mxu0 0.0
    %103 = vmatpush.msra.mxu0 0.0
    %104 = vmatpush.msra.mxu0 0.0
    %105 = vmatpush.msra.mxu0 0.0
    %106 = vmatpush.msra.mxu0 %v82
    %107 = vmatpush.msra.mxu0 %v80
    %108 = vmatpush.msra.mxu0 %v78
    %109 = vmatpush.msra.mxu0 %v76
    %110 = vmatmul.f32.gmra.mxu0 %v92
    %v111 = vpop.f32.mrf.mxu0
    %v112 = vadd.f32 %v86, %v111
    %113 = vdwg.mxu0
    %114 = vmatpush.msra.mxu0 0.0
    %115 = vmatpush.msra.mxu0 0.0
    %116 = vmatpush.msra.mxu0 0.0
    %117 = vmatpush.msra.mxu0 0.0
    %118 = vmatpush.msra.mxu0 0.0
    %119 = vmatpush.msra.mxu0 0.0
    %120 = vmatpush.msra.mxu0 0.0
    %121 = vmatpush.msra.mxu0 0.0
    %122 = vmatpush.msra.mxu0 0.0
    %123 = vmatpush.msra.mxu0 0.0
    %124 = vmatpush.msra.mxu0 0.0
    %125 = vmatpush.msra.mxu0 0.0
    %126 = vmatpush.msra.mxu0 %v83
    %127 = vmatpush.msra.mxu0 %v81
    %128 = vmatpush.msra.mxu0 %v79
    %129 = vmatpush.msra.mxu0 %v77
    %130 = vmatmul.f32.gmra.mxu0 %v92
    %v131 = vpop.f32.mrf.mxu0
    %v132 = vadd.f32 %v87, %v131
    %133 = vdwg.mxu0
    %v134 = vmul.f32 %v132, 0.5
    %v135 = vmul.f32 %v134, 1.442695
    %v136 = vpow.pop %v135
    %v137 = vld [vmem:[#allocation8] sm:$0xff]
    %v138 = vmul.f32 %v136, %v137
    %v139 = vadd.f32 %v112, %v138
    %140 = vst [vmem:[#allocation10] sm:$0xff] %v139
    // Predicated region
    $region34: #{tpu_custom_call.1} parent=1 // pred_check
      _
    $region35: #{tpu_custom_call.1} parent=1 // pred_check_branch
      %142 = sbr.rel (0) target = $region37
    $region36: #{tpu_custom_call.1} parent=1 // pred_region
      %144 = vsyncadd [#allocation4], 0
      %s146 = sshll.u32 [#allocation10], 4
      %s147 = int_to_ptr.vmem [resolvable:$true] %s146
      %s148 = sshll.u32 %s4, 4
      %s149 = int_to_ptr.hbm [resolvable:$true] %s148
      %151 = dma.vmem_to_hbm [thread:$0]  %s147, 128, %s149, [#allocation4]
    $region37: #{tpu_custom_call.1} parent=1 // pred_fallthru
      _
    // Predicated region
    $region38: #{tpu_custom_call.1} parent=1 // pred_check
      _
    $region39: #{tpu_custom_call.1} parent=1 // pred_check_branch
      %153 = sbr.rel (0) target = $region41
    $region40: #{tpu_custom_call.1} parent=1 // pred_region
      %155 = dma.done [#allocation4], 128
    $region41: #{tpu_custom_call.1} parent=1 // pred_fallthru
      _
    %156 = vsyncpa [#allocation3], 1
    %157 = vsyncpa [#allocation6], 1
    %158 = vsyncpa [#allocation9], 1
    %159 = vsyncpa [#allocation4], 1

</llo_original>
